<compile_context>
chip_gen: v6e
topology: v6e:2x2x1
jax: 0.10.0
libtpu: 0.0.40
codegen_flags: <defaults>
</compile_context>

<pallas_src>
import functools

import jax
import jax.numpy as jnp
from jax.experimental import pallas as pl
from jax.experimental.pallas import tpu as pltpu

LATENT = (32, 32, 32, 1)     # latent_dim from the module
HIDDEN = 128                 # lin1 output width
CAT_DIM = sum(LATENT)        # 97 = concat width

# Row layout of the packed bf16 weight slab [WSLAB_ROWS, 128]
# (all offsets are multiples of 16 so bf16 sublane tiles stay aligned).
ROWS_W0 = 0       # rows   0:16  -> W0   [F, 32]   at cols 0:32  (F <= 16)
ROWS_W1 = 16      # rows  16:48  -> W1   [32, 32]  at cols 0:32
ROWS_W2 = 48      # rows  48:80  -> W2   [32, 32]  at cols 0:32
ROWS_W3 = 80      # rows  80:112 -> W3   [32, 1]   at col 0 (lanes 1:32 zero-pad)
ROWS_LIN1 = 112   # rows 112:240 -> lin1 [97, 128] zero-padded to [128, 128]
ROWS_LIN2 = 240   # rows 240:368 -> lin2 [128, C]  zero-padded to [128, 128]
WSLAB_ROWS = 368
BIAS_ROWS = 8     # f32 bias slab rows: b0, b1, b2, b3, lin1_b, lin2_b, 0, 0


def gnn_kernel(a_ref, x_ref, mask_ref, w_ref, b_ref, out_ref, cat_ref):
    f32, bf16 = jnp.float32, jnp.bfloat16
    num_feat = x_ref.shape[-1]
    num_classes = out_ref.shape[-1]

    a = a_ref[0]     # [N, N] bf16 normalized adjacency of this subgraph
    x = x_ref[0]     # [N, F] bf16 node features

    # Static slices of the packed weight / bias slabs (zero runtime cost to index).
    w0 = w_ref[ROWS_W0:ROWS_W0 + num_feat, 0:32]
    w1 = w_ref[ROWS_W1:ROWS_W1 + 32, 0:32]
    w2 = w_ref[ROWS_W2:ROWS_W2 + 32, 0:32]
    w3 = w_ref[ROWS_W3:ROWS_W3 + 32, 0:32]      # lane 0 is the real [32,1] W3, lanes 1:32 zero
    lw1 = w_ref[ROWS_LIN1:ROWS_LIN1 + 128, :]   # [128,128], rows 97:128 zero
    lw2 = w_ref[ROWS_LIN2:ROWS_LIN2 + 128, :]   # [128,128], cols C:128 zero
    b0, b1 = b_ref[0:1, 0:32], b_ref[1:2, 0:32]
    b2, b3 = b_ref[2:3, 0:32], b_ref[3:4, 0:32]  # b3 lanes 1:32 are zero
    lb1, lb2 = b_ref[4:5, :], b_ref[5:6, :]

    # Layer 0: tanh((A @ X) @ W0 + b0) == tanh(A @ (X @ W0) + b0); cheaper since F < 32.
    ax = jnp.dot(a, x, preferred_element_type=f32)
    h0 = jnp.tanh(jnp.dot(ax.astype(bf16), w0, preferred_element_type=f32) + b0)

    def gcn_tanh(h, w, b):
        # GCNConv + tanh: tanh(A_norm @ (h @ W) + b), bf16 MXU inputs, f32 accumulate.
        msg = jnp.dot(h.astype(bf16), w, preferred_element_type=f32)
        agg = jnp.dot(a, msg.astype(bf16), preferred_element_type=f32)
        return jnp.tanh(agg + b)

    h1 = gcn_tanh(h0, w1, b1)
    h2 = gcn_tanh(h1, w2, b2)
    h3 = gcn_tanh(h2, w3, b3)   # [N,32]; lane 0 is the real 1-wide state, lanes 1:32 == 0

    # concat_states as a lane-dense [N, 128] slab (lanes 97:128 are exactly zero,
    # and lin1's padded rows 97:128 are zero too, so the padding contributes nothing).
    cat_ref[:, 0:32] = h0
    cat_ref[:, 32:64] = h1
    cat_ref[:, 64:96] = h2
    cat_ref[:, 96:128] = h3

    # global_add_pool over this graph's valid nodes (mask row is 1 for real, 0 for pad).
    pooled = jnp.dot(mask_ref[0], cat_ref[...], preferred_element_type=f32)   # [1, 128]

    # relu(lin1(.)); F.dropout(p=0.5, training=False) is identity.
    z1 = jnp.maximum(
        jnp.dot(pooled.astype(bf16), lw1, preferred_element_type=f32) + lb1, 0.0)
    # lin2
    z2 = (jnp.dot(z1.astype(bf16), lw2, preferred_element_type=f32) + lb2)[:, 0:num_classes]

    # log_softmax along the class dim (max-stabilized).
    zmax = jnp.max(z2, axis=-1, keepdims=True)
    lse = zmax + jnp.log(jnp.sum(jnp.exp(z2 - zmax), axis=-1, keepdims=True))
    out_ref[0] = z2 - lse


@functools.partial(jax.jit, static_argnames=("num_classes",))
def gnn_forward(a, x, mask, wslab, bias, *, num_classes):
    """a:[B,N,N] bf16, x:[B,N,F] bf16, mask:[B,1,N] f32, wslab:[368,128] bf16, bias:[8,128] f32."""
    num_graphs, n, _ = a.shape
    num_feat = x.shape[-1]

    flops_per_graph = (
        2 * n * n * num_feat + 2 * n * num_feat * 32        # layer 0
        + 3 * (2 * n * 32 * 32 + 2 * n * n * 32)            # layers 1..3
        + 2 * n * HIDDEN                                    # pooling matvec
        + 2 * HIDDEN * HIDDEN + 2 * HIDDEN * HIDDEN)        # lin1, lin2 (padded)
    cost = pl.CostEstimate(
        flops=num_graphs * flops_per_graph,
        transcendentals=num_graphs * (n * HIDDEN + num_classes),
        bytes_accessed=(a.size * a.dtype.itemsize + x.size * x.dtype.itemsize
                        + mask.size * mask.dtype.itemsize
                        + wslab.size * wslab.dtype.itemsize
                        + bias.size * bias.dtype.itemsize
                        + num_graphs * num_classes * 4),
    )

    out = pl.pallas_call(
        gnn_kernel,
        out_shape=jax.ShapeDtypeStruct((num_graphs, 1, num_classes), jnp.float32),
        grid_spec=pltpu.PrefetchScalarGridSpec(
            num_scalar_prefetch=0,
            grid=(num_graphs,),
            in_specs=[
                pl.BlockSpec((1, n, n), lambda g: (g, 0, 0)),           # A_norm per graph
                pl.BlockSpec((1, n, num_feat), lambda g: (g, 0, 0)),    # X per graph
                pl.BlockSpec((1, 1, n), lambda g: (g, 0, 0)),           # valid-node mask
                pl.BlockSpec((WSLAB_ROWS, 128), lambda g: (0, 0)),      # weights: VMEM-resident
                pl.BlockSpec((BIAS_ROWS, 128), lambda g: (0, 0)),       # biases: VMEM-resident
            ],
            out_specs=pl.BlockSpec((1, 1, num_classes), lambda g: (g, 0, 0)),
            scratch_shapes=[pltpu.VMEM((n, 128), jnp.float32)],         # concat_states slab
        ),
        compiler_params=pltpu.CompilerParams(
            dimension_semantics=("parallel",)),   # graph axis independent -> v7x 2nd TC
        cost_estimate=cost,
    )(a, x, mask, wslab, bias)
    return out[:, 0, :]


def glorot(key, shape):
    fan_in, fan_out = shape
    lim = (6.0 / (fan_in + fan_out)) ** 0.5
    return jax.random.uniform(key, shape, jnp.float32, -lim, lim)


def pack_params(params, num_feat, num_classes):
    """Pack all GNN weights into one bf16 [368,128] slab + one f32 [8,128] bias slab."""
    assert num_feat <= ROWS_W1 - ROWS_W0
    w = jnp.zeros((WSLAB_ROWS, 128), jnp.float32)
    w = w.at[ROWS_W0:ROWS_W0 + num_feat, 0:LATENT[0]].set(params["w0"])
    w = w.at[ROWS_W1:ROWS_W1 + LATENT[0], 0:LATENT[1]].set(params["w1"])
    w = w.at[ROWS_W2:ROWS_W2 + LATENT[1], 0:LATENT[2]].set(params["w2"])
    w = w.at[ROWS_W3:ROWS_W3 + LATENT[2], 0:LATENT[3]].set(params["w3"])
    w = w.at[ROWS_LIN1:ROWS_LIN1 + CAT_DIM, :].set(params["lin1_w"])
    w = w.at[ROWS_LIN2:ROWS_LIN2 + HIDDEN, 0:num_classes].set(params["lin2_w"])

    b = jnp.zeros((BIAS_ROWS, 128), jnp.float32)
    b = b.at[0, 0:LATENT[0]].set(params["b0"])
    b = b.at[1, 0:LATENT[1]].set(params["b1"])
    b = b.at[2, 0:LATENT[2]].set(params["b2"])
    b = b.at[3, 0:LATENT[3]].set(params["b3"])
    b = b.at[4, 0:HIDDEN].set(params["lin1_b"])
    b = b.at[5, 0:num_classes].set(params["lin2_b"])
    return w.astype(jnp.bfloat16), b


def build_graph(key, n_valid, n_max, n_edges=40):
    """Dense GCN-normalized adjacency D^-1/2 (A+I) D^-1/2, padded to n_max nodes."""
    k1, k2 = jax.random.split(key)
    src = jax.random.randint(k1, (n_edges,), 0, n_valid)
    dst = jax.random.randint(k2, (n_edges,), 0, n_valid)
    adj = jnp.zeros((n_max, n_max), jnp.float32).at[dst, src].set(1.0)
    adj = adj * (1.0 - jnp.eye(n_max, dtype=jnp.float32))     # strip self edges
    valid = (jnp.arange(n_max) < n_valid).astype(jnp.float32)
    adj_hat = adj + jnp.diag(valid)                           # self loops on valid nodes only
    deg = jnp.sum(adj_hat, axis=1)
    dinv = jnp.where(deg > 0, 1.0 / jnp.sqrt(deg), 0.0)
    return dinv[:, None] * adj_hat * dinv[None, :], valid


def reference_forward(a, x, valid, params):
    """Pure-JAX f32 reference of the module's eval-mode forward."""
    h = x
    states = []
    for i in range(4):
        h = jnp.tanh(jnp.einsum("bij,bjk->bik", a, h @ params[f"w{i}"]) + params[f"b{i}"])
        states.append(h)
    cat = jnp.concatenate(states, axis=-1)             # [B, N, 97]
    pooled = jnp.einsum("bn,bnk->bk", valid, cat)      # global_add_pool
    z1 = jax.nn.relu(pooled @ params["lin1_w"] + params["lin1_b"])
    z2 = z1 @ params["lin2_w"] + params["lin2_b"]
    return jax.nn.log_softmax(z2, axis=-1)


if __name__ == "__main__":
    # B padded IGMC subgraphs, NMAX nodes each, F input features, C classes.
    B, NMAX, F, C = 4, 16, 8, 5
    node_counts = [16, 12, 16, 10]

    key = jax.random.PRNGKey(0)
    keys = jax.random.split(key, 20)

    graphs = [build_graph(keys[g], node_counts[g], NMAX) for g in range(B)]
    a_f32 = jnp.stack([g[0] for g in graphs])            # [B, N, N]
    valid = jnp.stack([g[1] for g in graphs])            # [B, N] 1/0 valid-node mask
    x_f32 = jax.random.normal(keys[4], (B, NMAX, F), jnp.float32) * valid[:, :, None]

    params = {
        "w0": glorot(keys[5], (F, LATENT[0])),
        "w1": glorot(keys[6], (LATENT[0], LATENT[1])),
        "w2": glorot(keys[7], (LATENT[1], LATENT[2])),
        "w3": glorot(keys[8], (LATENT[2], LATENT[3])),
        "b0": 0.1 * jax.random.normal(keys[9], (LATENT[0],), jnp.float32),
        "b1": 0.1 * jax.random.normal(keys[10], (LATENT[1],), jnp.float32),
        "b2": 0.1 * jax.random.normal(keys[11], (LATENT[2],), jnp.float32),
        "b3": 0.1 * jax.random.normal(keys[12], (LATENT[3],), jnp.float32),
        "lin1_w": glorot(keys[13], (CAT_DIM, HIDDEN)),    # lin1.weight.T  [97, 128]
        "lin1_b": 0.1 * jax.random.normal(keys[14], (HIDDEN,), jnp.float32),
        "lin2_w": glorot(keys[15], (HIDDEN, C)),          # lin2.weight.T  [128, C]
        "lin2_b": 0.1 * jax.random.normal(keys[16], (C,), jnp.float32),
    }

    wslab, bias = pack_params(params, F, C)
    a_bf = a_f32.astype(jnp.bfloat16)
    x_bf = x_f32.astype(jnp.bfloat16)
    mask = valid[:, None, :]                              # [B, 1, N] f32 pooling mask

    out = gnn_forward(a_bf, x_bf, mask, wslab, bias, num_classes=C)   # [B, C] log-probs
    out = jax.block_until_ready(out)

    assert out.shape == (B, C)
    assert bool(jnp.all(jnp.isfinite(out)))
    prob_sums = jnp.sum(jnp.exp(out), axis=-1)            # log_softmax sanity check
    assert bool(jnp.all(jnp.abs(prob_sums - 1.0) < 1e-3))

    ref = reference_forward(a_f32, x_f32, valid, params)  # f32 reference; kernel is bf16
    max_err = float(jnp.max(jnp.abs(out - ref)))
    assert max_err < 2.5e-1, f"kernel/reference mismatch: max|err|={max_err}"

    print("KERNEL_OK")
</pallas_src>

<mosaic_0001>
module attributes {stable_mosaic.version = 11 : i64} {
  func.func @gnn_kernel(%arg0: i32, %arg1: memref<1x16x16xbf16, #tpu.memory_space<vmem>>, %arg2: memref<1x16x8xbf16, #tpu.memory_space<vmem>>, %arg3: memref<1x1x16xf32, #tpu.memory_space<vmem>>, %arg4: memref<368x128xbf16, #tpu.memory_space<vmem>>, %arg5: memref<8x128xf32, #tpu.memory_space<vmem>>, %arg6: memref<1x1x5xf32, #tpu.memory_space<vmem>>, %arg7: memref<16x128xf32, #tpu.memory_space<vmem>>) attributes {dimension_semantics = [#tpu.dimension_semantics<parallel>], iteration_bounds = array<i64: 4>, scalar_prefetch = 0 : i64, scratch_operands = 1 : i64, tpu.core_type = #tpu.core_type<tc>, window_params = [{transform_indices = @transform_0, window_bounds = array<i64: 1, 16, 16>}, {transform_indices = @transform_1, window_bounds = array<i64: 1, 16, 8>}, {transform_indices = @transform_2, window_bounds = array<i64: 1, 1, 16>}, {pipeline_mode = #tpu.pipeline_mode<synchronous>, transform_indices = @transform_3, window_bounds = array<i64: 368, 128>}, {pipeline_mode = #tpu.pipeline_mode<synchronous>, transform_indices = @transform_4, window_bounds = array<i64: 8, 128>}, {transform_indices = @transform_5, window_bounds = array<i64: 1, 1, 5>}]} {
    %c0 = arith.constant 0 : index
    %c0_0 = arith.constant 0 : index
    %c0_1 = arith.constant 0 : index
    %0 = vector.load %arg1[%c0, %c0_0, %c0_1] : memref<1x16x16xbf16, #tpu.memory_space<vmem>>, vector<1x16x16xbf16>
    %1 = vector.shape_cast %0 : vector<1x16x16xbf16> to vector<16x16xbf16>
    %c0_2 = arith.constant 0 : index
    %c0_3 = arith.constant 0 : index
    %c0_4 = arith.constant 0 : index
    %2 = vector.load %arg2[%c0_2, %c0_3, %c0_4] : memref<1x16x8xbf16, #tpu.memory_space<vmem>>, vector<1x16x8xbf16>
    %3 = vector.shape_cast %2 : vector<1x16x8xbf16> to vector<16x8xbf16>
    %c0_5 = arith.constant 0 : index
    %c0_6 = arith.constant 0 : index
    %4 = vector.load %arg4[%c0_5, %c0_6] : memref<368x128xbf16, #tpu.memory_space<vmem>>, vector<8x32xbf16>
    %c16 = arith.constant 16 : index
    %c0_7 = arith.constant 0 : index
    %5 = vector.load %arg4[%c16, %c0_7] : memref<368x128xbf16, #tpu.memory_space<vmem>>, vector<32x32xbf16>
    %c48 = arith.constant 48 : index
    %c0_8 = arith.constant 0 : index
    %6 = vector.load %arg4[%c48, %c0_8] : memref<368x128xbf16, #tpu.memory_space<vmem>>, vector<32x32xbf16>
    %c80 = arith.constant 80 : index
    %c0_9 = arith.constant 0 : index
    %7 = vector.load %arg4[%c80, %c0_9] : memref<368x128xbf16, #tpu.memory_space<vmem>>, vector<32x32xbf16>
    %c112 = arith.constant 112 : index
    %c0_10 = arith.constant 0 : index
    %8 = vector.load %arg4[%c112, %c0_10] : memref<368x128xbf16, #tpu.memory_space<vmem>>, vector<128x128xbf16>
    %c240 = arith.constant 240 : index
    %c0_11 = arith.constant 0 : index
    %9 = vector.load %arg4[%c240, %c0_11] : memref<368x128xbf16, #tpu.memory_space<vmem>>, vector<128x128xbf16>
    %c0_12 = arith.constant 0 : index
    %c0_13 = arith.constant 0 : index
    %10 = vector.load %arg5[%c0_12, %c0_13] : memref<8x128xf32, #tpu.memory_space<vmem>>, vector<1x32xf32>
    %c1 = arith.constant 1 : index
    %c0_14 = arith.constant 0 : index
    %11 = vector.load %arg5[%c1, %c0_14] : memref<8x128xf32, #tpu.memory_space<vmem>>, vector<1x32xf32>
    %c2 = arith.constant 2 : index
    %c0_15 = arith.constant 0 : index
    %12 = vector.load %arg5[%c2, %c0_15] : memref<8x128xf32, #tpu.memory_space<vmem>>, vector<1x32xf32>
    %c3 = arith.constant 3 : index
    %c0_16 = arith.constant 0 : index
    %13 = vector.load %arg5[%c3, %c0_16] : memref<8x128xf32, #tpu.memory_space<vmem>>, vector<1x32xf32>
    %c4 = arith.constant 4 : index
    %c0_17 = arith.constant 0 : index
    %14 = vector.load %arg5[%c4, %c0_17] : memref<8x128xf32, #tpu.memory_space<vmem>>, vector<1x128xf32>
    %c5 = arith.constant 5 : index
    %c0_18 = arith.constant 0 : index
    %15 = vector.load %arg5[%c5, %c0_18] : memref<8x128xf32, #tpu.memory_space<vmem>>, vector<1x128xf32>
    %cst = arith.constant dense<0.000000e+00> : vector<16x8xf32>
    %16 = tpu.matmul %1, %3, %cst {dimension_numbers = #tpu.dot_dimension_numbers<[1], [0], [0], [1], [0, 0, 1, 1], [], []>} : vector<16x16xbf16>, vector<16x8xbf16>, vector<16x8xf32> -> vector<16x8xf32>
    %17 = arith.truncf %16 : vector<16x8xf32> to vector<16x8xbf16>
    %cst_19 = arith.constant dense<0.000000e+00> : vector<16x32xf32>
    %18 = tpu.matmul %17, %4, %cst_19 {dimension_numbers = #tpu.dot_dimension_numbers<[1], [0], [0], [1], [0, 0, 1, 1], [], []>} : vector<16x8xbf16>, vector<8x32xbf16>, vector<16x32xf32> -> vector<16x32xf32>
    %19 = vector.broadcast %10 : vector<1x32xf32> to vector<16x32xf32>
    %20 = arith.addf %18, %19 : vector<16x32xf32>
    %21 = math.tanh %20 : vector<16x32xf32>
    %22 = arith.truncf %21 : vector<16x32xf32> to vector<16x32xbf16>
    %cst_20 = arith.constant dense<0.000000e+00> : vector<16x32xf32>
    %23 = tpu.matmul %22, %5, %cst_20 {dimension_numbers = #tpu.dot_dimension_numbers<[1], [0], [0], [1], [0, 0, 1, 1], [], []>} : vector<16x32xbf16>, vector<32x32xbf16>, vector<16x32xf32> -> vector<16x32xf32>
    %24 = arith.truncf %23 : vector<16x32xf32> to vector<16x32xbf16>
    %cst_21 = arith.constant dense<0.000000e+00> : vector<16x32xf32>
    %25 = tpu.matmul %1, %24, %cst_21 {dimension_numbers = #tpu.dot_dimension_numbers<[1], [0], [0], [1], [0, 0, 1, 1], [], []>} : vector<16x16xbf16>, vector<16x32xbf16>, vector<16x32xf32> -> vector<16x32xf32>
    %26 = vector.broadcast %11 : vector<1x32xf32> to vector<16x32xf32>
    %27 = arith.addf %25, %26 : vector<16x32xf32>
    %28 = math.tanh %27 : vector<16x32xf32>
    %29 = arith.truncf %28 : vector<16x32xf32> to vector<16x32xbf16>
    %cst_22 = arith.constant dense<0.000000e+00> : vector<16x32xf32>
    %30 = tpu.matmul %29, %6, %cst_22 {dimension_numbers = #tpu.dot_dimension_numbers<[1], [0], [0], [1], [0, 0, 1, 1], [], []>} : vector<16x32xbf16>, vector<32x32xbf16>, vector<16x32xf32> -> vector<16x32xf32>
    %31 = arith.truncf %30 : vector<16x32xf32> to vector<16x32xbf16>
    %cst_23 = arith.constant dense<0.000000e+00> : vector<16x32xf32>
    %32 = tpu.matmul %1, %31, %cst_23 {dimension_numbers = #tpu.dot_dimension_numbers<[1], [0], [0], [1], [0, 0, 1, 1], [], []>} : vector<16x16xbf16>, vector<16x32xbf16>, vector<16x32xf32> -> vector<16x32xf32>
    %33 = vector.broadcast %12 : vector<1x32xf32> to vector<16x32xf32>
    %34 = arith.addf %32, %33 : vector<16x32xf32>
    %35 = math.tanh %34 : vector<16x32xf32>
    %36 = arith.truncf %35 : vector<16x32xf32> to vector<16x32xbf16>
    %cst_24 = arith.constant dense<0.000000e+00> : vector<16x32xf32>
    %37 = tpu.matmul %36, %7, %cst_24 {dimension_numbers = #tpu.dot_dimension_numbers<[1], [0], [0], [1], [0, 0, 1, 1], [], []>} : vector<16x32xbf16>, vector<32x32xbf16>, vector<16x32xf32> -> vector<16x32xf32>
    %38 = arith.truncf %37 : vector<16x32xf32> to vector<16x32xbf16>
    %cst_25 = arith.constant dense<0.000000e+00> : vector<16x32xf32>
    %39 = tpu.matmul %1, %38, %cst_25 {dimension_numbers = #tpu.dot_dimension_numbers<[1], [0], [0], [1], [0, 0, 1, 1], [], []>} : vector<16x16xbf16>, vector<16x32xbf16>, vector<16x32xf32> -> vector<16x32xf32>
    %40 = vector.broadcast %13 : vector<1x32xf32> to vector<16x32xf32>
    %41 = arith.addf %39, %40 : vector<16x32xf32>
    %42 = math.tanh %41 : vector<16x32xf32>
    %c0_26 = arith.constant 0 : index
    %c0_27 = arith.constant 0 : index
    %43 = vector.load %arg7[%c0_26, %c0_27] : memref<16x128xf32, #tpu.memory_space<vmem>>, vector<16x32xf32>
    tpu.vector_store %arg7[%c0_26, %c0_27], %21 {strides = array<i32>} : memref<16x128xf32, #tpu.memory_space<vmem>>, vector<16x32xf32>,
    %c0_28 = arith.constant 0 : index
    %c32 = arith.constant 32 : index
    %44 = vector.load %arg7[%c0_28, %c32] : memref<16x128xf32, #tpu.memory_space<vmem>>, vector<16x32xf32>
    tpu.vector_store %arg7[%c0_28, %c32], %28 {strides = array<i32>} : memref<16x128xf32, #tpu.memory_space<vmem>>, vector<16x32xf32>,
    %c0_29 = arith.constant 0 : index
    %c64 = arith.constant 64 : index
    %45 = vector.load %arg7[%c0_29, %c64] : memref<16x128xf32, #tpu.memory_space<vmem>>, vector<16x32xf32>
    tpu.vector_store %arg7[%c0_29, %c64], %35 {strides = array<i32>} : memref<16x128xf32, #tpu.memory_space<vmem>>, vector<16x32xf32>,
    %c0_30 = arith.constant 0 : index
    %c96 = arith.constant 96 : index
    %46 = vector.load %arg7[%c0_30, %c96] : memref<16x128xf32, #tpu.memory_space<vmem>>, vector<16x32xf32>
    tpu.vector_store %arg7[%c0_30, %c96], %42 {strides = array<i32>} : memref<16x128xf32, #tpu.memory_space<vmem>>, vector<16x32xf32>,
    %c0_31 = arith.constant 0 : index
    %c0_32 = arith.constant 0 : index
    %c0_33 = arith.constant 0 : index
    %47 = vector.load %arg3[%c0_31, %c0_32, %c0_33] : memref<1x1x16xf32, #tpu.memory_space<vmem>>, vector<1x1x16xf32>
    %48 = vector.shape_cast %47 : vector<1x1x16xf32> to vector<1x16xf32>
    %c0_34 = arith.constant 0 : index
    %c0_35 = arith.constant 0 : index
    %49 = vector.load %arg7[%c0_34, %c0_35] : memref<16x128xf32, #tpu.memory_space<vmem>>, vector<16x128xf32>
    %cst_36 = arith.constant dense<0.000000e+00> : vector<1x128xf32>
    %50 = tpu.matmul %48, %49, %cst_36 {dimension_numbers = #tpu.dot_dimension_numbers<[1], [0], [0], [1], [0, 0, 1, 1], [], []>} : vector<1x16xf32>, vector<16x128xf32>, vector<1x128xf32> -> vector<1x128xf32>
    %51 = arith.truncf %50 : vector<1x128xf32> to vector<1x128xbf16>
    %cst_37 = arith.constant dense<0.000000e+00> : vector<1x128xf32>
    %52 = tpu.matmul %51, %8, %cst_37 {dimension_numbers = #tpu.dot_dimension_numbers<[1], [0], [0], [1], [0, 0, 1, 1], [], []>} : vector<1x128xbf16>, vector<128x128xbf16>, vector<1x128xf32> -> vector<1x128xf32>
    %53 = arith.addf %52, %14 : vector<1x128xf32>
    %cst_38 = arith.constant 0.000000e+00 : f32
    %54 = vector.broadcast %cst_38 : f32 to vector<1x128xf32>
    %55 = arith.maximumf %53, %54 : vector<1x128xf32>
    %56 = arith.truncf %55 : vector<1x128xf32> to vector<1x128xbf16>
    %cst_39 = arith.constant dense<0.000000e+00> : vector<1x128xf32>
    %57 = tpu.matmul %56, %9, %cst_39 {dimension_numbers = #tpu.dot_dimension_numbers<[1], [0], [0], [1], [0, 0, 1, 1], [], []>} : vector<1x128xbf16>, vector<128x128xbf16>, vector<1x128xf32> -> vector<1x128xf32>
    %58 = arith.addf %57, %15 : vector<1x128xf32>
    %59 = vector.extract_strided_slice %58 {offsets = [0, 0], sizes = [1, 5], strides = [1, 1]} : vector<1x128xf32> to vector<1x5xf32>
    %cst_40 = arith.constant dense<0xFF800000> : vector<1xf32>
    %60 = vector.multi_reduction <maximumf>, %59, %cst_40 [1] : vector<1x5xf32> to vector<1xf32>
    %61 = vector.shape_cast %60 : vector<1xf32> to vector<1x1xf32>
    %62 = vector.broadcast %61 : vector<1x1xf32> to vector<1x5xf32>
    %63 = arith.subf %59, %62 : vector<1x5xf32>
    %64 = math.exp %63 : vector<1x5xf32>
    %cst_41 = arith.constant dense<0.000000e+00> : vector<1xf32>
    %65 = vector.multi_reduction <add>, %64, %cst_41 [1] : vector<1x5xf32> to vector<1xf32>
    %66 = vector.shape_cast %65 : vector<1xf32> to vector<1x1xf32>
    %67 = math.log %66 : vector<1x1xf32>
    %68 = arith.addf %61, %67 : vector<1x1xf32>
    %69 = vector.broadcast %68 : vector<1x1xf32> to vector<1x5xf32>
    %70 = arith.subf %59, %69 : vector<1x5xf32>
    %c0_42 = arith.constant 0 : index
    %c0_43 = arith.constant 0 : index
    %c0_44 = arith.constant 0 : index
    %71 = vector.load %arg6[%c0_42, %c0_43, %c0_44] : memref<1x1x5xf32, #tpu.memory_space<vmem>>, vector<1x1x5xf32>
    %72 = vector.shape_cast %71 : vector<1x1x5xf32> to vector<1x5xf32>
    %73 = vector.shape_cast %70 : vector<1x5xf32> to vector<1x1x5xf32>
    tpu.vector_store %arg6[%c0_42, %c0_43, %c0_44], %73 {strides = array<i32>} : memref<1x1x5xf32, #tpu.memory_space<vmem>>, vector<1x1x5xf32>,
    return
  }
  func.func @transform_0(%arg0: i32) -> (i32, i32, i32) {
    %c0_i32 = arith.constant 0 : i32
    %c0_i32_0 = arith.constant 0 : i32
    %c0_i32_1 = arith.constant 0 : i32
    return %arg0, %c0_i32, %c0_i32_0 : i32, i32, i32
  }
  func.func @transform_1(%arg0: i32) -> (i32, i32, i32) {
    %c0_i32 = arith.constant 0 : i32
    %c0_i32_0 = arith.constant 0 : i32
    %c0_i32_1 = arith.constant 0 : i32
    return %arg0, %c0_i32, %c0_i32_0 : i32, i32, i32
  }
  func.func @transform_2(%arg0: i32) -> (i32, i32, i32) {
    %c0_i32 = arith.constant 0 : i32
    %c0_i32_0 = arith.constant 0 : i32
    %c0_i32_1 = arith.constant 0 : i32
    return %arg0, %c0_i32, %c0_i32_0 : i32, i32, i32
  }
  func.func @transform_3(%arg0: i32) -> (i32, i32) {
    %c0_i32 = arith.constant 0 : i32
    %c0_i32_0 = arith.constant 0 : i32
    %c0_i32_1 = arith.constant 0 : i32
    return %c0_i32, %c0_i32_0 : i32, i32
  }
  func.func @transform_4(%arg0: i32) -> (i32, i32) {
    %c0_i32 = arith.constant 0 : i32
    %c0_i32_0 = arith.constant 0 : i32
    %c0_i32_1 = arith.constant 0 : i32
    return %c0_i32, %c0_i32_0 : i32, i32
  }
  func.func @transform_5(%arg0: i32) -> (i32, i32, i32) {
    %c0_i32 = arith.constant 0 : i32
    %c0_i32_0 = arith.constant 0 : i32
    %c0_i32_1 = arith.constant 0 : i32
    return %arg0, %c0_i32, %c0_i32_0 : i32, i32, i32
  }
}

</mosaic_0001>

<llo_original>
// kernel: gnn_forward.1
$region0: #{gnn_forward.1}
  #allocation0 [shape = 'u32[]', space=smem, size = 0x4, offset = 0x4, fixed_abs, tag = 'smem constant byte address 0x4 - core index']
  #allocation1 [shape = 'u32[144,128]{1,0:T(1,128)}', space=vmem, size = 0x12000, scoped, tag = 'internal scratch']
  #allocation2 [shape = 'f32[16,128]{1,0:T(8,128)}', space=vmem, size = 0x2000, scoped, tag = 'scratch operand']
  %s0 = inlined_call_operand.vmem [shape: bf16[4,16,16], index: 0, kind: input, shape index: {}]
  %s1 = inlined_call_operand.vmem [shape: bf16[4,16,8], index: 1, kind: input, shape index: {}]
  %s2 = inlined_call_operand.vmem [shape: f32[4,1,16], index: 2, kind: input, shape index: {}]
  %s3 = inlined_call_operand.hbm [shape: bf16[368,128], index: 3, kind: input, shape index: {}]
  %s4 = inlined_call_operand.vmem [shape: f32[8,128], index: 4, kind: input, shape index: {}]
  %s5 = inlined_call_operand.hbm [shape: f32[4,1,5], index: 5, kind: output, shape index: {}]
  %s6 = sld [smem:[#allocation0]]
  $region57: #{gnn_forward.1} parent=0
    _
  %s8 = ssub.s32 1, %s6
  %s9 = scalar_select 0, %s8, %s6
  $region1: #{gnn_forward.1} parent=0
    #allocation3 [shape = 'u8[94208]{0}', space=vmem, size = 0x17000, scoped, tag = 'input window, operand 3, single buffered']
    #allocation4 [shape = 's32[2]{0}', space=sflag, size = 0x8, scoped, tag = 'scoped memory for gnn_forward.1']
    #allocation5 [shape = 's32[2]{0}', space=sflag, size = 0x8, scoped, tag = 'scoped memory for gnn_forward.1']
    #allocation6 [shape = 'u8[1024]{0}', space=vmem, size = 0x400, scoped, tag = 'output window, operand 0']
    %10 = vsyncpa [#allocation4], 0
    %11 = vsyncpa [#allocation5], 0
    %s12 = scalar_lea.sflag [#allocation5], 1
    %13 = vsyncpa %s12, 0
    loop: start=0, step=1, limit=6
    $region2: #{gnn_forward.1} parent=1 // loop_pre_header
      _
    $region3: #{gnn_forward.1} parent=1 // loop_header
      %s15 = sphi 0, %s19
      %p16 = scmp.ge.s32.totalorder %s15, 6
      %s25 = sphi 0, %s27
      %s28 = sphi 0, %s25
      %s29 = sphi 0, %s28
      %s45 = sphi 0, %s29
      %s51 = sphi 0, %s53
      %s54 = sphi 0, %s51
      %s55 = sphi 0, %s54
      %s71 = sphi 0, %s55
      %s77 = sphi 0, %s79
      %s80 = sphi 0, %s77
      %s81 = sphi 0, %s80
      %s97 = sphi 0, %s81
      %s101 = sphi 0, %s101
      %s103 = sphi 0, %s101
      %s104 = sphi 0, %s103
      %s118 = sphi 0, %s104
      %s122 = sphi 0, %s122
      %s124 = sphi 0, %s122
      %s125 = sphi 0, %s124
      %s139 = sphi 0, %s125
      %s145 = sphi 0, %s147
      %s148 = sphi 0, %s145
      %s149 = sphi 0, %s148
      %s165 = sphi 0, %s149
    $region4: #{gnn_forward.1} parent=1 // loop_header_branch
      %18 = sbr.rel (%p16) target = $region8
    $region5: #{gnn_forward.1} parent=1 // loop_body
      %s20 = ssub.s32 %s15, 1
      %s21 = ssub.s32 %s15, 2
      %s22 = sadd.s32 %s15, 1
      %s23 = ssub.s32 %s15, %s22
      %p24 = scmp.eq.s32.totalorder %s23, 0
      %s26 = sadd.s32 %s25, 1
      %s27 = scalar_select %p24, %s25, %s26
      %p30 = pneg %p24
      %p31 = scmp.eq.s32.totalorder %s15, 3
      %p32 = por %p30, %p31
      %p33 = scmp.ne.s32.totalorder %s25, %s28
      %p34 = scmp.eq.s32.totalorder %s15, 0
      %p35 = por %p33, %p34
      %p36 = scmp.ne.s32.totalorder %s25, %s28
      %p37 = scmp.eq.s32.totalorder %s20, 3
      %p38 = por %p36, %p37
      %p39 = scmp.ne.s32.totalorder %s28, %s29
      %p40 = scmp.eq.s32.totalorder %s20, 0
      %p41 = por %p39, %p40
      %p42 = scmp.ne.s32.totalorder %s28, %s29
      %p43 = scmp.eq.s32.totalorder %s21, 3
      %p44 = por %p42, %p43
      %p46 = scmp.ne.s32.totalorder %s29, %s45
      %p47 = scmp.eq.s32.totalorder %s21, 0
      %p48 = por %p46, %p47
      %s49 = ssub.s32 %s15, %s22
      %p50 = scmp.eq.s32.totalorder %s49, 0
      %s52 = sadd.s32 %s51, 1
      %s53 = scalar_select %p50, %s51, %s52
      %p56 = pneg %p50
      %p57 = scmp.eq.s32.totalorder %s15, 3
      %p58 = por %p56, %p57
      %p59 = scmp.ne.s32.totalorder %s51, %s54
      %p60 = scmp.eq.s32.totalorder %s15, 0
      %p61 = por %p59, %p60
      %p62 = scmp.ne.s32.totalorder %s51, %s54
      %p63 = scmp.eq.s32.totalorder %s20, 3
      %p64 = por %p62, %p63
      %p65 = scmp.ne.s32.totalorder %s54, %s55
      %p66 = scmp.eq.s32.totalorder %s20, 0
      %p67 = por %p65, %p66
      %p68 = scmp.ne.s32.totalorder %s54, %s55
      %p69 = scmp.eq.s32.totalorder %s21, 3
      %p70 = por %p68, %p69
      %p72 = scmp.ne.s32.totalorder %s55, %s71
      %p73 = scmp.eq.s32.totalorder %s21, 0
      %p74 = por %p72, %p73
      %s75 = ssub.s32 %s15, %s22
      %p76 = scmp.eq.s32.totalorder %s75, 0
      %s78 = sadd.s32 %s77, 1
      %s79 = scalar_select %p76, %s77, %s78
      %p82 = pneg %p76
      %p83 = scmp.eq.s32.totalorder %s15, 3
      %p84 = por %p82, %p83
      %p85 = scmp.ne.s32.totalorder %s77, %s80
      %p86 = scmp.eq.s32.totalorder %s15, 0
      %p87 = por %p85, %p86
      %p88 = scmp.ne.s32.totalorder %s77, %s80
      %p89 = scmp.eq.s32.totalorder %s20, 3
      %p90 = por %p88, %p89
      %p91 = scmp.ne.s32.totalorder %s80, %s81
      %p92 = scmp.eq.s32.totalorder %s20, 0
      %p93 = por %p91, %p92
      %p94 = scmp.ne.s32.totalorder %s80, %s81
      %p95 = scmp.eq.s32.totalorder %s21, 3
      %p96 = por %p94, %p95
      %p98 = scmp.ne.s32.totalorder %s81, %s97
      %p99 = scmp.eq.s32.totalorder %s21, 0
      %p100 = por %p98, %p99
      %s102 = sadd.s32 %s101, 1
      %p105 = scmp.eq.s32.totalorder %s15, 3
      %p106 = scmp.ne.s32.totalorder %s101, %s103
      %p107 = scmp.eq.s32.totalorder %s15, 0
      %p108 = por %p106, %p107
      %p109 = scmp.ne.s32.totalorder %s101, %s103
      %p110 = scmp.eq.s32.totalorder %s20, 3
      %p111 = por %p109, %p110
      %p112 = scmp.ne.s32.totalorder %s103, %s104
      %p113 = scmp.eq.s32.totalorder %s20, 0
      %p114 = por %p112, %p113
      %p115 = scmp.ne.s32.totalorder %s103, %s104
      %p116 = scmp.eq.s32.totalorder %s21, 3
      %p117 = por %p115, %p116
      %p119 = scmp.ne.s32.totalorder %s104, %s118
      %p120 = scmp.eq.s32.totalorder %s21, 0
      %p121 = por %p119, %p120
      %s123 = sadd.s32 %s122, 1
      %p126 = scmp.eq.s32.totalorder %s15, 3
      %p127 = scmp.ne.s32.totalorder %s122, %s124
      %p128 = scmp.eq.s32.totalorder %s15, 0
      %p129 = por %p127, %p128
      %p130 = scmp.ne.s32.totalorder %s122, %s124
      %p131 = scmp.eq.s32.totalorder %s20, 3
      %p132 = por %p130, %p131
      %p133 = scmp.ne.s32.totalorder %s124, %s125
      %p134 = scmp.eq.s32.totalorder %s20, 0
      %p135 = por %p133, %p134
      %p136 = scmp.ne.s32.totalorder %s124, %s125
      %p137 = scmp.eq.s32.totalorder %s21, 3
      %p138 = por %p136, %p137
      %p140 = scmp.ne.s32.totalorder %s125, %s139
      %p141 = scmp.eq.s32.totalorder %s21, 0
      %p142 = por %p140, %p141
      %s143 = ssub.s32 %s15, %s22
      %p144 = scmp.eq.s32.totalorder %s143, 0
      %s146 = sadd.s32 %s145, 1
      %s147 = scalar_select %p144, %s145, %s146
      %p150 = pneg %p144
      %p151 = scmp.eq.s32.totalorder %s15, 3
      %p152 = por %p150, %p151
      %p153 = scmp.ne.s32.totalorder %s145, %s148
      %p154 = scmp.eq.s32.totalorder %s15, 0
      %p155 = por %p153, %p154
      %p156 = scmp.ne.s32.totalorder %s145, %s148
      %p157 = scmp.eq.s32.totalorder %s20, 3
      %p158 = por %p156, %p157
      %p159 = scmp.ne.s32.totalorder %s148, %s149
      %p160 = scmp.eq.s32.totalorder %s20, 0
      %p161 = por %p159, %p160
      %p162 = scmp.ne.s32.totalorder %s148, %s149
      %p163 = scmp.eq.s32.totalorder %s21, 3
      %p164 = por %p162, %p163
      %p166 = scmp.ne.s32.totalorder %s149, %s165
      %p167 = scmp.eq.s32.totalorder %s21, 0
      %p168 = por %p166, %p167
      %p169 = scmp.le.s32.totalorder 1, %s15
      %p170 = scmp.lt.s32.totalorder %s15, 5
      %p171 = pnand %p169, %p170
      %p172 = pneg %p171
      // Predicated region
      $region9: #{gnn_forward.1} parent=5 // pred_check
        _
      $region10: #{gnn_forward.1} parent=5 // pred_check_branch
        %174 = sbr.rel (%p171) target = $region12
      $region11: #{gnn_forward.1} parent=5 // pred_region
        %s175 = ssub.s32 %s15, 1
        // Predicated region
        $region13: #{gnn_forward.1} parent=11 // pred_check
          %p176 = pneg %p114
        $region14: #{gnn_forward.1} parent=11 // pred_check_branch
          %178 = sbr.rel (%p176) target = $region16
        $region15: #{gnn_forward.1} parent=11 // pred_region
          %s180 = ssub.s32 2944, 2944
          %181 = vsyncadd [#allocation4], %s180
          %s182 = sshll.u32 [#allocation3], 4
          %s183 = int_to_ptr.vmem [resolvable:$true] %s182
          %188 = dma.hbm_to_vmem [thread:$0]  %s3, 2944, %s183, [#allocation4], 64, 64, 4
        $region16: #{gnn_forward.1} parent=11 // pred_fallthru
          _
        // Predicated region
        $region17: #{gnn_forward.1} parent=11 // pred_check
          %p189 = pneg %p135
        $region18: #{gnn_forward.1} parent=11 // pred_check_branch
          %191 = sbr.rel (%p189) target = $region20
        $region19: #{gnn_forward.1} parent=11 // pred_region
          _
        $region20: #{gnn_forward.1} parent=11 // pred_fallthru
          _
      $region12: #{gnn_forward.1} parent=5 // pred_fallthru
        _
      %p192 = scmp.lt.s32.totalorder %s15, 4
      // Predicated region
      $region21: #{gnn_forward.1} parent=5 // pred_check
        %p193 = pneg %p192
      $region22: #{gnn_forward.1} parent=5 // pred_check_branch
        %195 = sbr.rel (%p193) target = $region24
      $region23: #{gnn_forward.1} parent=5 // pred_region
        // Predicated region
        $region25: #{gnn_forward.1} parent=23 // pred_check
          %p196 = pneg %p35
        $region26: #{gnn_forward.1} parent=23 // pred_check_branch
          %198 = sbr.rel (%p196) target = $region28
        $region27: #{gnn_forward.1} parent=23 // pred_region
          %p199 = scmp.lt.s32.totalorder %s15, 3
          %s200 = scalar_select %p199, %s15, 3
          %s201 = smul.addr %s200, 2
          %s202 = smul.addr %s201, 4
          %s203 = scalar_lea.vmem %s0, %s202
        $region28: #{gnn_forward.1} parent=23 // pred_fallthru
          _
        // Predicated region
        $region29: #{gnn_forward.1} parent=23 // pred_check
          %p204 = pneg %p61
        $region30: #{gnn_forward.1} parent=23 // pred_check_branch
          %206 = sbr.rel (%p204) target = $region32
        $region31: #{gnn_forward.1} parent=23 // pred_region
          %p207 = scmp.lt.s32.totalorder %s15, 3
          %s208 = scalar_select %p207, %s15, 3
          %s209 = smul.addr %s208, 2
          %s210 = smul.addr %s209, 4
          %s211 = scalar_lea.vmem %s1, %s210
        $region32: #{gnn_forward.1} parent=23 // pred_fallthru
          _
        // Predicated region
        $region33: #{gnn_forward.1} parent=23 // pred_check
          %p212 = pneg %p87
        $region34: #{gnn_forward.1} parent=23 // pred_check_branch
          %214 = sbr.rel (%p212) target = $region36
        $region35: #{gnn_forward.1} parent=23 // pred_region
          %p215 = scmp.lt.s32.totalorder %s15, 3
          %s216 = scalar_select %p215, %s15, 3
          %s217 = scalar_lea.vmem %s2, %s216
        $region36: #{gnn_forward.1} parent=23 // pred_fallthru
          _
      $region24: #{gnn_forward.1} parent=5 // pred_fallthru
        _
      %p218 = scmp.le.s32.totalorder 1, %s15
      %p219 = scmp.lt.s32.totalorder %s15, 5
      %p220 = pnand %p218, %p219
      %p221 = pneg %p220
      // Predicated region
      $region37: #{gnn_forward.1} parent=5 // pred_check
        _
      $region38: #{gnn_forward.1} parent=5 // pred_check_branch
        %223 = sbr.rel (%p220) target = $region40
      $region39: #{gnn_forward.1} parent=5 // pred_region
        %s224 = ssub.s32 %s15, 1
        // Predicated region
        $region41: #{gnn_forward.1} parent=39 // pred_check
          %p225 = pneg %p114
        $region42: #{gnn_forward.1} parent=39 // pred_check_branch
          %227 = sbr.rel (%p225) target = $region44
        $region43: #{gnn_forward.1} parent=39 // pred_region
          %228 = dma.done [#allocation4], 2944
        $region44: #{gnn_forward.1} parent=39 // pred_fallthru
          _
        %p229 = scmp.lt.s32.totalorder %s20, 3
        %s230 = scalar_select %p229, %s20, 3
        %s231 = smul.addr %s230, 2
        %s232 = smul.addr %s231, 4
        %s233 = scalar_lea.vmem %s0, %s232
        %p234 = pneg %p41
        %p235 = pneg %p38
        %p236 = scmp.lt.s32.totalorder %s20, 3
        %s237 = scalar_select %p236, %s20, 3
        %s238 = smul.addr %s237, 2
        %s239 = smul.addr %s238, 4
        %s240 = scalar_lea.vmem %s1, %s239
        %p241 = pneg %p67
        %p242 = pneg %p64
        %p243 = scmp.lt.s32.totalorder %s20, 3
        %s244 = scalar_select %p243, %s20, 3
        %s245 = scalar_lea.vmem %s2, %s244
        %p246 = pneg %p93
        %p247 = pneg %p90
        %p248 = pneg %p114
        %p249 = pneg %p111
        %p250 = pneg %p135
        %p251 = pneg %p132
        %p252 = pneg %p161
        %p253 = pneg %p158
        %s254 = sand.u32 %s148, 1
        %s255 = scalar_lea.sflag [#allocation5], %s254
        %s256 = sand.u32 %s148, 1
        %s257 = scalar_lea.vmem [#allocation6], %s256
        %p258 = scmp.lt.s32.totalorder %s20, 3
        %s259 = scalar_select %p258, %s20, 3
        %s260 = smul.addr %s259, 2
        %s261 = smul.addr %s260, 4
        %s262 = scalar_lea.vmem %s0, %s261
        %p263 = scmp.lt.s32.totalorder %s20, 3
        %s264 = scalar_select %p263, %s20, 3
        %s265 = smul.addr %s264, 2
        %s266 = smul.addr %s265, 4
        %s267 = scalar_lea.vmem %s1, %s266
        %p268 = scmp.lt.s32.totalorder %s20, 3
        %s269 = scalar_select %p268, %s20, 3
        %s270 = scalar_lea.vmem %s2, %s269
        %v272 = vld [vmem:[%s262] sm:$0xf]
        %v273 = vld [vmem:[%s262 + $0x4] sm:$0xf]
        %v274 = vld [vmem:[%s267] sm:$0xf]
        %v275 = vld [vmem:[%s267 + $0x4] sm:$0xf]
        %v276 = vld [vmem:[#allocation3] sm:$0xf]
        %v277 = vld [vmem:[#allocation3 + $0x8] sm:$0xf]
        %v278 = vld [vmem:[#allocation3 + $0xc] sm:$0xf]
        %v279 = vld [vmem:[#allocation3 + $0x10] sm:$0xf]
        %v280 = vld [vmem:[#allocation3 + $0x14] sm:$0xf]
        %v281 = vld [vmem:[#allocation3 + $0x18] sm:$0xf]
        %v282 = vld [vmem:[#allocation3 + $0x1c] sm:$0xf]
        %v283 = vld [vmem:[#allocation3 + $0x20] sm:$0xf]
        %v284 = vld [vmem:[#allocation3 + $0x24] sm:$0xf]
        %v285 = vld [vmem:[#allocation3 + $0x28] sm:$0xf]
        %v286 = vld [vmem:[#allocation3 + $0x2c] sm:$0xf]
        %v287 = vld [vmem:[#allocation3 + $0x30] sm:$0xf]
        %v288 = vld [vmem:[#allocation3 + $0x34] sm:$0xf]
        %v289 = vld [vmem:[#allocation3 + $0x38] sm:$0xf]
        %v290 = vld [vmem:[#allocation3 + $0x3c] sm:$0xf]
        %v291 = vld [vmem:[#allocation3 + $0x40] sm:$0xf]
        %v292 = vld [vmem:[#allocation3 + $0x44] sm:$0xf]
        %v293 = vld [vmem:[#allocation3 + $0x48] sm:$0xf]
        %v294 = vld [vmem:[#allocation3 + $0x4c] sm:$0xf]
        %v295 = vld [vmem:[#allocation3 + $0x50] sm:$0xf]
        %v296 = vld [vmem:[#allocation3 + $0x54] sm:$0xf]
        %v297 = vld [vmem:[#allocation3 + $0x58] sm:$0xf]
        %v298 = vld [vmem:[#allocation3 + $0x5c] sm:$0xf]
        %v299 = vld [vmem:[#allocation3 + $0x60] sm:$0xf]
        %v300 = vld [vmem:[#allocation3 + $0x64] sm:$0xf]
        %v301 = vld [vmem:[#allocation3 + $0x68] sm:$0xf]
        %v302 = vld [vmem:[#allocation3 + $0x6c] sm:$0xf]
        %v303 = vld [vmem:[#allocation3 + $0x70] sm:$0xf]
        %v304 = vld [vmem:[#allocation3 + $0x74] sm:$0xf]
        %v305 = vld [vmem:[#allocation3 + $0x78] sm:$0xf]
        %v306 = vld [vmem:[#allocation3 + $0x7c] sm:$0xf]
        %v307 = vld [vmem:[#allocation3 + $0x80] sm:$0xf]
        %v308 = vld [vmem:[#allocation3 + $0x84] sm:$0xf]
        %v309 = vld [vmem:[#allocation3 + $0x88] sm:$0xf]
        %v310 = vld [vmem:[#allocation3 + $0x8c] sm:$0xf]
        %v311 = vld [vmem:[#allocation3 + $0x90] sm:$0xf]
        %v312 = vld [vmem:[#allocation3 + $0x94] sm:$0xf]
        %v313 = vld [vmem:[#allocation3 + $0x98] sm:$0xf]
        %v314 = vld [vmem:[#allocation3 + $0x9c] sm:$0xf]
        %v315 = vld [vmem:[#allocation3 + $0xa0] sm:$0xf]
        %v316 = vld [vmem:[#allocation3 + $0xa4] sm:$0xf]
        %v317 = vld [vmem:[#allocation3 + $0xa8] sm:$0xf]
        %v318 = vld [vmem:[#allocation3 + $0xac] sm:$0xf]
        %v319 = vld [vmem:[#allocation3 + $0xb0] sm:$0xf]
        %v320 = vld [vmem:[#allocation3 + $0xb4] sm:$0xf]
        %v321 = vld [vmem:[%s4] sm:$0x1]
        %v322 = vld [vmem:[%s4 + $0x1] sm:$0x1]
        %v323 = vld [vmem:[%s4 + $0x2] sm:$0x1]
        %v324 = vld [vmem:[%s4 + $0x3] sm:$0x1]
        %v325 = vld [vmem:[%s4 + $0x4] sm:$0x1]
        %v326 = vld [vmem:[%s4 + $0x5] sm:$0x1]
        %v329 = vunpack.c.l.b16 %v272
        %v330 = vunpack.c.l.b16 %v273
        %v331 = vpack.c.b16 %v330, %v329
        %v334 = vunpack.c.l.b16 %v274
        %v335 = vunpack.c.l.b16 %v275
        %v336 = vpack.c.b16 %v335, %v334
        %vm338 = vcmask 130048
        %v340 = vsel %vm338, %v331, 0
        %342 = vmatprep.subr.bf16.mxu0 0
        %343 = vmatpush1.bf16.msra.mxu0 0
        %344 = vmatprep.subr.bf16.mxu0 0
        %345 = vmatpush1.bf16.msra.mxu0 0
        %346 = vmatprep.subr.bf16.mxu0 0
        %347 = vmatpush1.bf16.msra.mxu0 0
        %348 = vmatprep.subr.bf16.mxu0 0
        %349 = vmatpush1.bf16.msra.mxu0 0
        %350 = vmatprep.subr.bf16.mxu0 0
        %351 = vmatpush1.bf16.msra.mxu0 0
        %352 = vmatprep.subr.bf16.mxu0 0
        %353 = vmatpush1.bf16.msra.mxu0 0
        %354 = vmatprep.subr.bf16.mxu0 0
        %355 = vmatpush1.bf16.msra.mxu0 0
        %356 = vmatprep.subr.bf16.mxu0 0
        %357 = vmatpush1.bf16.msra.mxu0 %v336
        %358 = vmatprep.subr.bf16.mxu0 0
        %359 = vmatpush2.bf16.msra.mxu0 0
        %360 = vmatprep.subr.bf16.mxu0 0
        %361 = vmatpush2.bf16.msra.mxu0 0
        %362 = vmatprep.subr.bf16.mxu0 0
        %363 = vmatpush2.bf16.msra.mxu0 0
        %364 = vmatprep.subr.bf16.mxu0 0
        %365 = vmatpush2.bf16.msra.mxu0 0
        %366 = vmatprep.subr.bf16.mxu0 0
        %367 = vmatpush2.bf16.msra.mxu0 0
        %368 = vmatprep.subr.bf16.mxu0 0
        %369 = vmatpush2.bf16.msra.mxu0 0
        %370 = vmatprep.subr.bf16.mxu0 0
        %371 = vmatpush2.bf16.msra.mxu0 0
        %372 = vmatprep.subr.bf16.mxu0 0
        %373 = vmatpush2.bf16.msra.mxu0 0
        %374 = vmatprep.mubr.bf16.mxu0 0
        %375 = vmatmul.mubr.bf16.gmra.mxu0 %v340
        %v376 = vpop.f32.mrf.mxu0
        %v377 = vadd.f32 0.0, %v376
        %v378 = vpop.f32.mrf.mxu0
        %v379 = vpop.f32.mrf.mxu0
        %v380 = vadd.f32 0.0, %v379
        %v381 = vpop.f32.mrf.mxu0
        %382 = vdwg.mxu0
        %v383 = vpack.c.bf16 %v380, %v377
        %v384 = vlaneseq
        %v385 = vshrl.u32 %v384, 7
        %v386 = vsub.s32 0, %v385
        %v387 = vrot.slane %v321, %v386
        %vm388 = vcmask 64512
        %v390 = vsel %vm388, %v383, 0
        %vm392 = vcmask 1043456
        %v394 = vsel %vm392, %v276, 0
        %396 = vmatprep.subr.bf16.mxu0 0
        %397 = vmatpush1.bf16.msra.mxu0 0
        %398 = vmatprep.subr.bf16.mxu0 0
        %399 = vmatpush1.bf16.msra.mxu0 0
        %400 = vmatprep.subr.bf16.mxu0 0
        %401 = vmatpush1.bf16.msra.mxu0 0
        %402 = vmatprep.subr.bf16.mxu0 0
        %403 = vmatpush1.bf16.msra.mxu0 0
        %404 = vmatprep.subr.bf16.mxu0 0
        %405 = vmatpush1.bf16.msra.mxu0 0
        %406 = vmatprep.subr.bf16.mxu0 0
        %407 = vmatpush1.bf16.msra.mxu0 0
        %408 = vmatprep.subr.bf16.mxu0 0
        %409 = vmatpush1.bf16.msra.mxu0 0
        %410 = vmatprep.subr.bf16.mxu0 0
        %411 = vmatpush1.bf16.msra.mxu0 %v394
        %412 = vmatprep.subr.bf16.mxu0 0
        %413 = vmatpush2.bf16.msra.mxu0 0
        %414 = vmatprep.subr.bf16.mxu0 0
        %415 = vmatpush2.bf16.msra.mxu0 0
        %416 = vmatprep.subr.bf16.mxu0 0
        %417 = vmatpush2.bf16.msra.mxu0 0
        %418 = vmatprep.subr.bf16.mxu0 0
        %419 = vmatpush2.bf16.msra.mxu0 0
        %420 = vmatprep.subr.bf16.mxu0 0
        %421 = vmatpush2.bf16.msra.mxu0 0
        %422 = vmatprep.subr.bf16.mxu0 0
        %423 = vmatpush2.bf16.msra.mxu0 0
        %424 = vmatprep.subr.bf16.mxu0 0
        %425 = vmatpush2.bf16.msra.mxu0 0
        %426 = vmatprep.subr.bf16.mxu0 0
        %427 = vmatpush2.bf16.msra.mxu0 0
        %428 = vmatprep.mubr.bf16.mxu0 0
        %429 = vmatmul.mubr.bf16.gmra.mxu0 %v390
        %v430 = vpop.f32.mrf.mxu0
        %v431 = vadd.f32 %v387, %v430
        %v432 = vpop.f32.mrf.mxu0
        %v433 = vpop.f32.mrf.mxu0
        %v434 = vadd.f32 %v387, %v433
        %v435 = vpop.f32.mrf.mxu0
        %436 = vdwg.mxu0
        %v437 = vtanh.pop %v431
        %v438 = vtanh.pop %v434
        %v439 = vpack.c.bf16 %v438, %v437
        %v444 = vunpack.c.l.b16 %v277
        %v445 = vunpack.c.l.b16 %v278
        %v446 = vunpack.c.l.b16 %v279
        %v447 = vunpack.c.l.b16 %v280
        %v448 = vpack.c.b16 %v445, %v444
        %v449 = vpack.c.b16 %v447, %v446
        %vm452 = vcmask 261120
        %v454 = vsel %vm452, %v439, 0
        %456 = vmatprep.subr.bf16.mxu0 0
        %457 = vmatpush1.bf16.msra.mxu0 0
        %458 = vmatprep.subr.bf16.mxu0 0
        %459 = vmatpush1.bf16.msra.mxu0 0
        %460 = vmatprep.subr.bf16.mxu0 0
        %461 = vmatpush1.bf16.msra.mxu0 0
        %462 = vmatprep.subr.bf16.mxu0 0
        %463 = vmatpush1.bf16.msra.mxu0 0
        %464 = vmatprep.subr.bf16.mxu0 0
        %465 = vmatpush1.bf16.msra.mxu0 0
        %466 = vmatprep.subr.bf16.mxu0 0
        %467 = vmatpush1.bf16.msra.mxu0 0
        %468 = vmatprep.subr.bf16.mxu0 0
        %469 = vmatpush1.bf16.msra.mxu0 %v449
        %470 = vmatprep.subr.bf16.mxu0 0
        %471 = vmatpush1.bf16.msra.mxu0 %v448
        %472 = vmatprep.subr.bf16.mxu0 0
        %473 = vmatpush2.bf16.msra.mxu0 0
        %474 = vmatprep.subr.bf16.mxu0 0
        %475 = vmatpush2.bf16.msra.mxu0 0
        %476 = vmatprep.subr.bf16.mxu0 0
        %477 = vmatpush2.bf16.msra.mxu0 0
        %478 = vmatprep.subr.bf16.mxu0 0
        %479 = vmatpush2.bf16.msra.mxu0 0
        %480 = vmatprep.subr.bf16.mxu0 0
        %481 = vmatpush2.bf16.msra.mxu0 0
        %482 = vmatprep.subr.bf16.mxu0 0
        %483 = vmatpush2.bf16.msra.mxu0 0
        %484 = vmatprep.subr.bf16.mxu0 0
        %485 = vmatpush2.bf16.msra.mxu0 0
        %486 = vmatprep.subr.bf16.mxu0 0
        %487 = vmatpush2.bf16.msra.mxu0 0
        %488 = vmatprep.mubr.bf16.mxu0 0
        %489 = vmatmul.mubr.bf16.gmra.mxu0 %v454
        %v490 = vpop.f32.mrf.mxu0
        %v491 = vadd.f32 0.0, %v490
        %v492 = vpop.f32.mrf.mxu0
        %v493 = vpop.f32.mrf.mxu0
        %v494 = vadd.f32 0.0, %v493
        %v495 = vpop.f32.mrf.mxu0
        %496 = vdwg.mxu0
        %v497 = vpack.c.bf16 %v494, %v491
        %v498 = vlaneseq
        %v499 = vshrl.u32 %v498, 7
        %v500 = vsub.s32 0, %v499
        %v501 = vrot.slane %v322, %v500
        %502 = vmatprep.subr.bf16.mxu0 0
        %503 = vmatpush1.bf16.msra.mxu0 0
        %504 = vmatprep.subr.bf16.mxu0 0
        %505 = vmatpush1.bf16.msra.mxu0 0
        %506 = vmatprep.subr.bf16.mxu0 0
        %507 = vmatpush1.bf16.msra.mxu0 0
        %508 = vmatprep.subr.bf16.mxu0 0
        %509 = vmatpush1.bf16.msra.mxu0 0
        %510 = vmatprep.subr.bf16.mxu0 0
        %511 = vmatpush1.bf16.msra.mxu0 0
        %512 = vmatprep.subr.bf16.mxu0 0
        %513 = vmatpush1.bf16.msra.mxu0 0
        %514 = vmatprep.subr.bf16.mxu0 0
        %515 = vmatpush1.bf16.msra.mxu0 0
        %516 = vmatprep.subr.bf16.mxu0 0
        %517 = vmatpush1.bf16.msra.mxu0 %v497
        %518 = vmatprep.subr.bf16.mxu0 0
        %519 = vmatpush2.bf16.msra.mxu0 0
        %520 = vmatprep.subr.bf16.mxu0 0
        %521 = vmatpush2.bf16.msra.mxu0 0
        %522 = vmatprep.subr.bf16.mxu0 0
        %523 = vmatpush2.bf16.msra.mxu0 0
        %524 = vmatprep.subr.bf16.mxu0 0
        %525 = vmatpush2.bf16.msra.mxu0 0
        %526 = vmatprep.subr.bf16.mxu0 0
        %527 = vmatpush2.bf16.msra.mxu0 0
        %528 = vmatprep.subr.bf16.mxu0 0
        %529 = vmatpush2.bf16.msra.mxu0 0
        %530 = vmatprep.subr.bf16.mxu0 0
        %531 = vmatpush2.bf16.msra.mxu0 0
        %532 = vmatprep.subr.bf16.mxu0 0
        %533 = vmatpush2.bf16.msra.mxu0 0
        %534 = vmatprep.mubr.bf16.mxu0 0
        %535 = vmatmul.mubr.bf16.gmra.mxu0 %v340
        %v536 = vpop.f32.mrf.mxu0
        %v537 = vadd.f32 %v501, %v536
        %v538 = vpop.f32.mrf.mxu0
        %v539 = vpop.f32.mrf.mxu0
        %v540 = vadd.f32 %v501, %v539
        %v541 = vpop.f32.mrf.mxu0
        %542 = vdwg.mxu0
        %v543 = vtanh.pop %v537
        %v544 = vtanh.pop %v540
        %v545 = vpack.c.bf16 %v544, %v543
        %v550 = vunpack.c.l.b16 %v281
        %v551 = vunpack.c.l.b16 %v282
        %v552 = vunpack.c.l.b16 %v283
        %v553 = vunpack.c.l.b16 %v284
        %v554 = vpack.c.b16 %v551, %v550
        %v555 = vpack.c.b16 %v553, %v552
        %v559 = vsel %vm452, %v545, 0
        %561 = vmatprep.subr.bf16.mxu0 0
        %562 = vmatpush1.bf16.msra.mxu0 0
        %563 = vmatprep.subr.bf16.mxu0 0
        %564 = vmatpush1.bf16.msra.mxu0 0
        %565 = vmatprep.subr.bf16.mxu0 0
        %566 = vmatpush1.bf16.msra.mxu0 0
        %567 = vmatprep.subr.bf16.mxu0 0
        %568 = vmatpush1.bf16.msra.mxu0 0
        %569 = vmatprep.subr.bf16.mxu0 0
        %570 = vmatpush1.bf16.msra.mxu0 0
        %571 = vmatprep.subr.bf16.mxu0 0
        %572 = vmatpush1.bf16.msra.mxu0 0
        %573 = vmatprep.subr.bf16.mxu0 0
        %574 = vmatpush1.bf16.msra.mxu0 %v555
        %575 = vmatprep.subr.bf16.mxu0 0
        %576 = vmatpush1.bf16.msra.mxu0 %v554
        %577 = vmatprep.subr.bf16.mxu0 0
        %578 = vmatpush2.bf16.msra.mxu0 0
        %579 = vmatprep.subr.bf16.mxu0 0
        %580 = vmatpush2.bf16.msra.mxu0 0
        %581 = vmatprep.subr.bf16.mxu0 0
        %582 = vmatpush2.bf16.msra.mxu0 0
        %583 = vmatprep.subr.bf16.mxu0 0
        %584 = vmatpush2.bf16.msra.mxu0 0
        %585 = vmatprep.subr.bf16.mxu0 0
        %586 = vmatpush2.bf16.msra.mxu0 0
        %587 = vmatprep.subr.bf16.mxu0 0
        %588 = vmatpush2.bf16.msra.mxu0 0
        %589 = vmatprep.subr.bf16.mxu0 0
        %590 = vmatpush2.bf16.msra.mxu0 0
        %591 = vmatprep.subr.bf16.mxu0 0
        %592 = vmatpush2.bf16.msra.mxu0 0
        %593 = vmatprep.mubr.bf16.mxu0 0
        %594 = vmatmul.mubr.bf16.gmra.mxu0 %v559
        %v595 = vpop.f32.mrf.mxu0
        %v596 = vadd.f32 0.0, %v595
        %v597 = vpop.f32.mrf.mxu0
        %v598 = vpop.f32.mrf.mxu0
        %v599 = vadd.f32 0.0, %v598
        %v600 = vpop.f32.mrf.mxu0
        %601 = vdwg.mxu0
        %v602 = vpack.c.bf16 %v599, %v596
        %v603 = vlaneseq
        %v604 = vshrl.u32 %v603, 7
        %v605 = vsub.s32 0, %v604
        %v606 = vrot.slane %v323, %v605
        %607 = vmatprep.subr.bf16.mxu0 0
        %608 = vmatpush1.bf16.msra.mxu0 0
        %609 = vmatprep.subr.bf16.mxu0 0
        %610 = vmatpush1.bf16.msra.mxu0 0
        %611 = vmatprep.subr.bf16.mxu0 0
        %612 = vmatpush1.bf16.msra.mxu0 0
        %613 = vmatprep.subr.bf16.mxu0 0
        %614 = vmatpush1.bf16.msra.mxu0 0
        %615 = vmatprep.subr.bf16.mxu0 0
        %616 = vmatpush1.bf16.msra.mxu0 0
        %617 = vmatprep.subr.bf16.mxu0 0
        %618 = vmatpush1.bf16.msra.mxu0 0
        %619 = vmatprep.subr.bf16.mxu0 0
        %620 = vmatpush1.bf16.msra.mxu0 0
        %621 = vmatprep.subr.bf16.mxu0 0
        %622 = vmatpush1.bf16.msra.mxu0 %v602
        %623 = vmatprep.subr.bf16.mxu0 0
        %624 = vmatpush2.bf16.msra.mxu0 0
        %625 = vmatprep.subr.bf16.mxu0 0
        %626 = vmatpush2.bf16.msra.mxu0 0
        %627 = vmatprep.subr.bf16.mxu0 0
        %628 = vmatpush2.bf16.msra.mxu0 0
        %629 = vmatprep.subr.bf16.mxu0 0
        %630 = vmatpush2.bf16.msra.mxu0 0
        %631 = vmatprep.subr.bf16.mxu0 0
        %632 = vmatpush2.bf16.msra.mxu0 0
        %633 = vmatprep.subr.bf16.mxu0 0
        %634 = vmatpush2.bf16.msra.mxu0 0
        %635 = vmatprep.subr.bf16.mxu0 0
        %636 = vmatpush2.bf16.msra.mxu0 0
        %637 = vmatprep.subr.bf16.mxu0 0
        %638 = vmatpush2.bf16.msra.mxu0 0
        %639 = vmatprep.mubr.bf16.mxu0 0
        %640 = vmatmul.mubr.bf16.gmra.mxu0 %v340
        %v641 = vpop.f32.mrf.mxu0
        %v642 = vadd.f32 %v606, %v641
        %v643 = vpop.f32.mrf.mxu0
        %v644 = vpop.f32.mrf.mxu0
        %v645 = vadd.f32 %v606, %v644
        %v646 = vpop.f32.mrf.mxu0
        %647 = vdwg.mxu0
        %v648 = vtanh.pop %v642
        %v649 = vtanh.pop %v645
        %v650 = vpack.c.bf16 %v649, %v648
        %v655 = vunpack.c.l.b16 %v285
        %v656 = vunpack.c.l.b16 %v286
        %v657 = vunpack.c.l.b16 %v287
        %v658 = vunpack.c.l.b16 %v288
        %v659 = vpack.c.b16 %v656, %v655
        %v660 = vpack.c.b16 %v658, %v657
        %v664 = vsel %vm452, %v650, 0
        %666 = vmatprep.subr.bf16.mxu0 0
        %667 = vmatpush1.bf16.msra.mxu0 0
        %668 = vmatprep.subr.bf16.mxu0 0
        %669 = vmatpush1.bf16.msra.mxu0 0
        %670 = vmatprep.subr.bf16.mxu0 0
        %671 = vmatpush1.bf16.msra.mxu0 0
        %672 = vmatprep.subr.bf16.mxu0 0
        %673 = vmatpush1.bf16.msra.mxu0 0
        %674 = vmatprep.subr.bf16.mxu0 0
        %675 = vmatpush1.bf16.msra.mxu0 0
        %676 = vmatprep.subr.bf16.mxu0 0
        %677 = vmatpush1.bf16.msra.mxu0 0
        %678 = vmatprep.subr.bf16.mxu0 0
        %679 = vmatpush1.bf16.msra.mxu0 %v660
        %680 = vmatprep.subr.bf16.mxu0 0
        %681 = vmatpush1.bf16.msra.mxu0 %v659
        %682 = vmatprep.subr.bf16.mxu0 0
        %683 = vmatpush2.bf16.msra.mxu0 0
        %684 = vmatprep.subr.bf16.mxu0 0
        %685 = vmatpush2.bf16.msra.mxu0 0
        %686 = vmatprep.subr.bf16.mxu0 0
        %687 = vmatpush2.bf16.msra.mxu0 0
        %688 = vmatprep.subr.bf16.mxu0 0
        %689 = vmatpush2.bf16.msra.mxu0 0
        %690 = vmatprep.subr.bf16.mxu0 0
        %691 = vmatpush2.bf16.msra.mxu0 0
        %692 = vmatprep.subr.bf16.mxu0 0
        %693 = vmatpush2.bf16.msra.mxu0 0
        %694 = vmatprep.subr.bf16.mxu0 0
        %695 = vmatpush2.bf16.msra.mxu0 0
        %696 = vmatprep.subr.bf16.mxu0 0
        %697 = vmatpush2.bf16.msra.mxu0 0
        %698 = vmatprep.mubr.bf16.mxu0 0
        %699 = vmatmul.mubr.bf16.gmra.mxu0 %v664
        %v700 = vpop.f32.mrf.mxu0
        %v701 = vadd.f32 0.0, %v700
        %v702 = vpop.f32.mrf.mxu0
        %v703 = vpop.f32.mrf.mxu0
        %v704 = vadd.f32 0.0, %v703
        %v705 = vpop.f32.mrf.mxu0
        %706 = vdwg.mxu0
        %v707 = vpack.c.bf16 %v704, %v701
        %v708 = vlaneseq
        %v709 = vshrl.u32 %v708, 7
        %v710 = vsub.s32 0, %v709
        %v711 = vrot.slane %v324, %v710
        %712 = vmatprep.subr.bf16.mxu0 0
        %713 = vmatpush1.bf16.msra.mxu0 0
        %714 = vmatprep.subr.bf16.mxu0 0
        %715 = vmatpush1.bf16.msra.mxu0 0
        %716 = vmatprep.subr.bf16.mxu0 0
        %717 = vmatpush1.bf16.msra.mxu0 0
        %718 = vmatprep.subr.bf16.mxu0 0
        %719 = vmatpush1.bf16.msra.mxu0 0
        %720 = vmatprep.subr.bf16.mxu0 0
        %721 = vmatpush1.bf16.msra.mxu0 0
        %722 = vmatprep.subr.bf16.mxu0 0
        %723 = vmatpush1.bf16.msra.mxu0 0
        %724 = vmatprep.subr.bf16.mxu0 0
        %725 = vmatpush1.bf16.msra.mxu0 0
        %726 = vmatprep.subr.bf16.mxu0 0
        %727 = vmatpush1.bf16.msra.mxu0 %v707
        %728 = vmatprep.subr.bf16.mxu0 0
        %729 = vmatpush2.bf16.msra.mxu0 0
        %730 = vmatprep.subr.bf16.mxu0 0
        %731 = vmatpush2.bf16.msra.mxu0 0
        %732 = vmatprep.subr.bf16.mxu0 0
        %733 = vmatpush2.bf16.msra.mxu0 0
        %734 = vmatprep.subr.bf16.mxu0 0
        %735 = vmatpush2.bf16.msra.mxu0 0
        %736 = vmatprep.subr.bf16.mxu0 0
        %737 = vmatpush2.bf16.msra.mxu0 0
        %738 = vmatprep.subr.bf16.mxu0 0
        %739 = vmatpush2.bf16.msra.mxu0 0
        %740 = vmatprep.subr.bf16.mxu0 0
        %741 = vmatpush2.bf16.msra.mxu0 0
        %742 = vmatprep.subr.bf16.mxu0 0
        %743 = vmatpush2.bf16.msra.mxu0 0
        %744 = vmatprep.mubr.bf16.mxu0 0
        %745 = vmatmul.mubr.bf16.gmra.mxu0 %v340
        %v746 = vpop.f32.mrf.mxu0
        %v747 = vadd.f32 %v711, %v746
        %v748 = vpop.f32.mrf.mxu0
        %v749 = vpop.f32.mrf.mxu0
        %v750 = vadd.f32 %v711, %v749
        %v751 = vpop.f32.mrf.mxu0
        %752 = vdwg.mxu0
        %v753 = vtanh.pop %v747
        %v754 = vtanh.pop %v750
        %755 = vst.msk [vmem:[#allocation2] sm:$0xff] %vm452, %v437
        %756 = vst.msk [vmem:[#allocation2 + $0x8] sm:$0xff] %vm452, %v438
        %759 = vrot.lane.b32.xlu0 %v543, 32
        %v760 = vpop.permute.xlu0 %759
        %761 = vrot.lane.b32.xlu0 %v544, 32
        %v762 = vpop.permute.xlu0 %761
        %vm765 = vcmask 523520
        %766 = vst.msk [vmem:[#allocation2] sm:$0xff] %vm765, %v760
        %767 = vst.msk [vmem:[#allocation2 + $0x8] sm:$0xff] %vm765, %v762
        %770 = vrot.lane.b32.xlu0 %v648, 64
        %v771 = vpop.permute.xlu0 %770
        %772 = vrot.lane.b32.xlu0 %v649, 64
        %v773 = vpop.permute.xlu0 %772
        %vm776 = vcmask 785920
        %777 = vst.msk [vmem:[#allocation2] sm:$0xff] %vm776, %v771
        %778 = vst.msk [vmem:[#allocation2 + $0x8] sm:$0xff] %vm776, %v773
        %781 = vrot.lane.b32.xlu0 %v753, 96
        %v782 = vpop.permute.xlu0 %781
        %783 = vrot.lane.b32.xlu0 %v754, 96
        %v784 = vpop.permute.xlu0 %783
        %vm787 = vcmask 1048320
        %788 = vst.msk [vmem:[#allocation2] sm:$0xff] %vm787, %v782
        %789 = vst.msk [vmem:[#allocation2 + $0x8] sm:$0xff] %vm787, %v784
        %v790 = vld [vmem:[%s270] sm:$0x1]
        %v791 = vld [vmem:[#allocation2] sm:$0xff]
        %v792 = vld [vmem:[#allocation2 + $0x8] sm:$0xff]
        %v794 = vsel %vm338, %v790, 0
        %796 = vmatprep.subr.mxu0 0.0
        %797 = vmatpush1.msra.mxu0 0.0
        %798 = vmatprep.subr.mxu0 0.0
        %799 = vmatpush1.msra.mxu0 0.0
        %800 = vmatprep.subr.mxu0 0.0
        %801 = vmatpush1.msra.mxu0 0.0
        %802 = vmatprep.subr.mxu0 0.0
        %803 = vmatpush1.msra.mxu0 0.0
        %804 = vmatprep.subr.mxu0 0.0
        %805 = vmatpush1.msra.mxu0 0.0
        %806 = vmatprep.subr.mxu0 0.0
        %807 = vmatpush1.msra.mxu0 0.0
        %808 = vmatprep.subr.mxu0 0.0
        %809 = vmatpush1.msra.mxu0 0.0
        %810 = vmatprep.subr.mxu0 0.0
        %811 = vmatpush1.msra.mxu0 0.0
        %812 = vmatprep.subr.mxu0 0.0
        %813 = vmatpush1.msra.mxu0 0.0
        %814 = vmatprep.subr.mxu0 0.0
        %815 = vmatpush1.msra.mxu0 0.0
        %816 = vmatprep.subr.mxu0 0.0
        %817 = vmatpush1.msra.mxu0 0.0
        %818 = vmatprep.subr.mxu0 0.0
        %819 = vmatpush1.msra.mxu0 0.0
        %820 = vmatprep.subr.mxu0 0.0
        %821 = vmatpush1.msra.mxu0 0.0
        %822 = vmatprep.subr.mxu0 0.0
        %823 = vmatpush1.msra.mxu0 0.0
        %824 = vmatprep.subr.mxu0 0.0
        %825 = vmatpush1.msra.mxu0 %v792
        %826 = vmatprep.subr.mxu0 0.0
        %827 = vmatpush1.msra.mxu0 %v791
        %828 = vmatprep.subr.mxu0 0.0
        %829 = vmatpush2.msra.mxu0 0.0
        %830 = vmatprep.subr.mxu0 0.0
        %831 = vmatpush2.msra.mxu0 0.0
        %832 = vmatprep.subr.mxu0 0.0
        %833 = vmatpush2.msra.mxu0 0.0
        %834 = vmatprep.subr.mxu0 0.0
        %835 = vmatpush2.msra.mxu0 0.0
        %836 = vmatprep.subr.mxu0 0.0
        %837 = vmatpush2.msra.mxu0 0.0
        %838 = vmatprep.subr.mxu0 0.0
        %839 = vmatpush2.msra.mxu0 0.0
        %840 = vmatprep.subr.mxu0 0.0
        %841 = vmatpush2.msra.mxu0 0.0
        %842 = vmatprep.subr.mxu0 0.0
        %843 = vmatpush2.msra.mxu0 0.0
        %844 = vmatprep.subr.mxu0 0.0
        %845 = vmatpush2.msra.mxu0 0.0
        %846 = vmatprep.subr.mxu0 0.0
        %847 = vmatpush2.msra.mxu0 0.0
        %848 = vmatprep.subr.mxu0 0.0
        %849 = vmatpush2.msra.mxu0 0.0
        %850 = vmatprep.subr.mxu0 0.0
        %851 = vmatpush2.msra.mxu0 0.0
        %852 = vmatprep.subr.mxu0 0.0
        %853 = vmatpush2.msra.mxu0 0.0
        %854 = vmatprep.subr.mxu0 0.0
        %855 = vmatpush2.msra.mxu0 0.0
        %856 = vmatprep.subr.mxu0 0.0
        %857 = vmatpush2.msra.mxu0 0.0
        %858 = vmatprep.subr.mxu0 0.0
        %859 = vmatpush2.msra.mxu0 0.0
        %860 = vmatprep.mubr.f32.mxu0 0.0
        %861 = vmatmul.mubr.f32.gmra.mxu0 %v794
        %v862 = vpop.f32.mrf.mxu0
        %v863 = vadd.f32 0.0, %v862
        %v864 = vpop.f32.mrf.mxu0
        %865 = vdwg.mxu0
        %v866 = vpack.c.bf16 %v863, %v863
        %v883 = vunpack.c.l.b16 %v289
        %v884 = vunpack.c.l.b16 %v290
        %v885 = vunpack.c.l.b16 %v291
        %v886 = vunpack.c.l.b16 %v292
        %v887 = vunpack.c.l.b16 %v293
        %v888 = vunpack.c.l.b16 %v294
        %v889 = vunpack.c.l.b16 %v295
        %v890 = vunpack.c.l.b16 %v296
        %v891 = vunpack.c.l.b16 %v297
        %v892 = vunpack.c.l.b16 %v298
        %v893 = vunpack.c.l.b16 %v299
        %v894 = vunpack.c.l.b16 %v300
        %v895 = vunpack.c.l.b16 %v301
        %v896 = vunpack.c.l.b16 %v302
        %v897 = vunpack.c.l.b16 %v303
        %v898 = vunpack.c.l.b16 %v304
        %v899 = vpack.c.b16 %v884, %v883
        %v900 = vpack.c.b16 %v886, %v885
        %v901 = vpack.c.b16 %v888, %v887
        %v902 = vpack.c.b16 %v890, %v889
        %v903 = vpack.c.b16 %v892, %v891
        %v904 = vpack.c.b16 %v894, %v893
        %v905 = vpack.c.b16 %v896, %v895
        %v906 = vpack.c.b16 %v898, %v897
        %915 = vmatprep.subr.bf16.mxu0 0
        %916 = vmatpush1.bf16.msra.mxu0 %v906
        %917 = vmatprep.subr.bf16.mxu0 0
        %918 = vmatpush1.bf16.msra.mxu0 %v905
        %919 = vmatprep.subr.bf16.mxu0 0
        %920 = vmatpush1.bf16.msra.mxu0 %v904
        %921 = vmatprep.subr.bf16.mxu0 0
        %922 = vmatpush1.bf16.msra.mxu0 %v903
        %923 = vmatprep.subr.bf16.mxu0 0
        %924 = vmatpush1.bf16.msra.mxu0 %v902
        %925 = vmatprep.subr.bf16.mxu0 0
        %926 = vmatpush1.bf16.msra.mxu0 %v901
        %927 = vmatprep.subr.bf16.mxu0 0
        %928 = vmatpush1.bf16.msra.mxu0 %v900
        %929 = vmatprep.subr.bf16.mxu0 0
        %930 = vmatpush1.bf16.msra.mxu0 %v899
        %931 = vmatprep.subr.bf16.mxu0 0
        %932 = vmatpush2.bf16.msra.mxu0 0
        %933 = vmatprep.subr.bf16.mxu0 0
        %934 = vmatpush2.bf16.msra.mxu0 0
        %935 = vmatprep.subr.bf16.mxu0 0
        %936 = vmatpush2.bf16.msra.mxu0 0
        %937 = vmatprep.subr.bf16.mxu0 0
        %938 = vmatpush2.bf16.msra.mxu0 0
        %939 = vmatprep.subr.bf16.mxu0 0
        %940 = vmatpush2.bf16.msra.mxu0 0
        %941 = vmatprep.subr.bf16.mxu0 0
        %942 = vmatpush2.bf16.msra.mxu0 0
        %943 = vmatprep.subr.bf16.mxu0 0
        %944 = vmatpush2.bf16.msra.mxu0 0
        %945 = vmatprep.subr.bf16.mxu0 0
        %946 = vmatpush2.bf16.msra.mxu0 0
        %947 = vmatprep.mubr.bf16.mxu0 0
        %948 = vmatmul.mubr.bf16.gmra.mxu0 %v866
        %v949 = vpop.f32.mrf.mxu0
        %v950 = vadd.f32 %v325, %v949
        %v951 = vpop.f32.mrf.mxu0
        %v952 = vpop.f32.mrf.mxu0
        %v953 = vpop.f32.mrf.mxu0
        %954 = vdwg.mxu0
        %v955 = vmax.f32 %v950, 0.0
        %v956 = vpack.c.bf16 %v955, %v955
        %v973 = vunpack.c.l.b16 %v305
        %v974 = vunpack.c.l.b16 %v306
        %v975 = vunpack.c.l.b16 %v307
        %v976 = vunpack.c.l.b16 %v308
        %v977 = vunpack.c.l.b16 %v309
        %v978 = vunpack.c.l.b16 %v310
        %v979 = vunpack.c.l.b16 %v311
        %v980 = vunpack.c.l.b16 %v312
        %v981 = vunpack.c.l.b16 %v313
        %v982 = vunpack.c.l.b16 %v314
        %v983 = vunpack.c.l.b16 %v315
        %v984 = vunpack.c.l.b16 %v316
        %v985 = vunpack.c.l.b16 %v317
        %v986 = vunpack.c.l.b16 %v318
        %v987 = vunpack.c.l.b16 %v319
        %v988 = vunpack.c.l.b16 %v320
        %v989 = vpack.c.b16 %v974, %v973
        %v990 = vpack.c.b16 %v976, %v975
        %v991 = vpack.c.b16 %v978, %v977
        %v992 = vpack.c.b16 %v980, %v979
        %v993 = vpack.c.b16 %v982, %v981
        %v994 = vpack.c.b16 %v984, %v983
        %v995 = vpack.c.b16 %v986, %v985
        %v996 = vpack.c.b16 %v988, %v987
        %1005 = vmatprep.subr.bf16.mxu0 0
        %1006 = vmatpush1.bf16.msra.mxu0 %v996
        %1007 = vmatprep.subr.bf16.mxu0 0
        %1008 = vmatpush1.bf16.msra.mxu0 %v995
        %1009 = vmatprep.subr.bf16.mxu0 0
        %1010 = vmatpush1.bf16.msra.mxu0 %v994
        %1011 = vmatprep.subr.bf16.mxu0 0
        %1012 = vmatpush1.bf16.msra.mxu0 %v993
        %1013 = vmatprep.subr.bf16.mxu0 0
        %1014 = vmatpush1.bf16.msra.mxu0 %v992
        %1015 = vmatprep.subr.bf16.mxu0 0
        %1016 = vmatpush1.bf16.msra.mxu0 %v991
        %1017 = vmatprep.subr.bf16.mxu0 0
        %1018 = vmatpush1.bf16.msra.mxu0 %v990
        %1019 = vmatprep.subr.bf16.mxu0 0
        %1020 = vmatpush1.bf16.msra.mxu0 %v989
        %1021 = vmatprep.subr.bf16.mxu0 0
        %1022 = vmatpush2.bf16.msra.mxu0 0
        %1023 = vmatprep.subr.bf16.mxu0 0
        %1024 = vmatpush2.bf16.msra.mxu0 0
        %1025 = vmatprep.subr.bf16.mxu0 0
        %1026 = vmatpush2.bf16.msra.mxu0 0
        %1027 = vmatprep.subr.bf16.mxu0 0
        %1028 = vmatpush2.bf16.msra.mxu0 0
        %1029 = vmatprep.subr.bf16.mxu0 0
        %1030 = vmatpush2.bf16.msra.mxu0 0
        %1031 = vmatprep.subr.bf16.mxu0 0
        %1032 = vmatpush2.bf16.msra.mxu0 0
        %1033 = vmatprep.subr.bf16.mxu0 0
        %1034 = vmatpush2.bf16.msra.mxu0 0
        %1035 = vmatprep.subr.bf16.mxu0 0
        %1036 = vmatpush2.bf16.msra.mxu0 0
        %1037 = vmatprep.mubr.bf16.mxu0 0
        %1038 = vmatmul.mubr.bf16.gmra.mxu0 %v956
        %v1039 = vpop.f32.mrf.mxu0
        %v1040 = vadd.f32 %v326, %v1039
        %v1041 = vpop.f32.mrf.mxu0
        %v1042 = vpop.f32.mrf.mxu0
        %v1043 = vpop.f32.mrf.mxu0
        %1044 = vdwg.mxu0
        %vm1045 = vcmask 32768
        %v1046 = vsel %vm1045, %v1040, -inf
        %1047 = vmax.xlane.f32.xlu0 %v1046
        %v1048 = vpop.xlane.xlu0 %1047
        %v1049 = vsub.f32 %v1040, %v1048
        %v1050 = vmul.f32 %v1049, 1.442695
        %v1051 = vpow.pop %v1050
        %v1052 = vsel %vm1045, %v1051, 0.0
        %1053 = vadd.xlane.f32.xlu0 %v1052
        %v1054 = vpop.xlane.xlu0 %1053
        %v1055 = vlog2.pop %v1054
        %v1056 = vmul.f32 %v1055, 0.6931472
        %v1057 = vadd.f32 %v1048, %v1056
        %v1058 = vsub.f32 %v1040, %v1057
        %1059 = vst.msk [vmem:[%s257] sm:$0x1] %vm1045, %v1058
        %s1060 = sand.u32 %s148, 1
        %s1061 = scalar_lea.sflag [#allocation5], %s1060
        %s1062 = sand.u32 %s148, 1
        %s1063 = scalar_lea.vmem [#allocation6], %s1062
        // Predicated region
        $region45: #{gnn_forward.1} parent=39 // pred_check
          %p1064 = pneg %p158
        $region46: #{gnn_forward.1} parent=39 // pred_check_branch
          %1066 = sbr.rel (%p1064) target = $region48
        $region47: #{gnn_forward.1} parent=39 // pred_region
          %s1068 = ssub.s32 16, 16
          %1069 = vsyncadd %s1061, %s1068
          %s1070 = smul.addr %s20, 16
          %s1071 = scalar_lea.hbm %s5, %s1070
          %s1073 = sshll.u32 %s1063, 4
          %s1074 = int_to_ptr.vmem [resolvable:$true] %s1073
          %1076 = dma.vmem_to_hbm [thread:$0]  %s1074, 16, %s1071, %s1061
        $region48: #{gnn_forward.1} parent=39 // pred_fallthru
          _
      $region40: #{gnn_forward.1} parent=5 // pred_fallthru
        _
      %p1077 = scmp.le.s32.totalorder 2, %s15
      // Predicated region
      $region49: #{gnn_forward.1} parent=5 // pred_check
        %p1078 = pneg %p1077
      $region50: #{gnn_forward.1} parent=5 // pred_check_branch
        %1080 = sbr.rel (%p1078) target = $region52
      $region51: #{gnn_forward.1} parent=5 // pred_region
        %s1081 = ssub.s32 %s15, 2
        // Predicated region
        $region53: #{gnn_forward.1} parent=51 // pred_check
          %p1082 = pneg %p164
        $region54: #{gnn_forward.1} parent=51 // pred_check_branch
          %1084 = sbr.rel (%p1082) target = $region56
        $region55: #{gnn_forward.1} parent=51 // pred_region
          %s1085 = sand.u32 %s149, 1
          %s1086 = scalar_lea.sflag [#allocation5], %s1085
          %s1087 = sand.u32 %s149, 1
          %s1088 = scalar_lea.vmem [#allocation6], %s1087
          %1089 = dma.done %s1086, 16
        $region56: #{gnn_forward.1} parent=51 // pred_fallthru
          _
      $region52: #{gnn_forward.1} parent=5 // pred_fallthru
        _
    $region6: #{gnn_forward.1} parent=1 // loop_footer
      %s19 = sadd.s32 1, %s15
    $region7: #{gnn_forward.1} parent=1 // loop_footer_branch
      %14 = sbr.rel target = $region3
    $region8: #{gnn_forward.1} parent=1 // loop_exit
      _
    %1090 = vsyncpa [#allocation4], 1
    %s1091 = scalar_lea.sflag [#allocation4], 1
    %1092 = vsyncpa %s1091, 1
    %1093 = vsyncpa [#allocation5], 1
    %s1094 = scalar_lea.sflag [#allocation5], 1
    %1095 = vsyncpa %s1094, 1

</llo_original>
